<compile_context>
chip_gen: v5e
topology: v5e:2x2
jax: 0.10.0
libtpu: 0.0.40
codegen_flags: <defaults>
</compile_context>

<pallas_src>
import math
from functools import partial

import jax
import jax.numpy as jnp
import numpy as np
from jax.experimental import pallas as pl
from jax.experimental.pallas import tpu as pltpu

_BN_EPS = 1e-5
_MAX_TM = 512  # rows per tile cap; per-grid-step overhead is only ~0.35 us


def _round_up(n, m):
    return -(-n // m) * m


def _pad_dim(n):
    # Lane-padding policy: multiples of 128; layers wider than 128 align to
    # 256 so a single tile fills the 2x256^2 MXU on v6e/v7x.
    return _round_up(n, 256) if n > 128 else 128


# ----------------------------------------------------------------------------
# Kernel
# ----------------------------------------------------------------------------
def _make_kernel(bf16_tanh: bool):
    def kernel(x_ref, w1, b1, w2, b2, wl1, bl1, wl2, bl2, wl3, bl3, o_ref):
        def layer(h, w_ref, b_ref, act):
            # bf16 operands on the MXU, f32 accumulate + f32 bias add (VPU).
            y = jnp.dot(h, w_ref[...],
                        preferred_element_type=jnp.float32) + b_ref[...]
            if not act:
                return y
            if bf16_tanh:                       # v6e/v7x: bf16 EUP path
                return jnp.tanh(y.astype(jnp.bfloat16))
            return jnp.tanh(y).astype(jnp.bfloat16)   # v5e: f32 EUP only

        # x may already be bf16 upstream; the cast is then a no-op.
        h = x_ref[...].astype(jnp.bfloat16)
        h = layer(h, w1, b1, True)      # conv1 + BN1 (folded) + tanh
        h = layer(h, w2, b2, True)      # conv2 + BN2 (folded) + tanh
        h = layer(h, wl1, bl1, True)    # l1 + BN + tanh
        h = layer(h, wl2, bl2, True)    # l2 + BN + tanh
        o_ref[...] = layer(h, wl3, bl3, False).astype(o_ref.dtype)  # l3

    return kernel


# ----------------------------------------------------------------------------
# Host-side parameter preparation (done once, outside the hot path)
# ----------------------------------------------------------------------------
def _fold_bn(bias, gamma, beta, mean, var, eps=_BN_EPS):
    bias, gamma, beta, mean, var = (np.asarray(a, np.float32)
                                    for a in (bias, gamma, beta, mean, var))
    scale = gamma / np.sqrt(var + eps)
    shift = (bias - mean) * scale + beta
    return scale, shift


def _conv_as_band_matrix(w_eff, L_in):
    """Valid conv1d as a dense matrix.

    Input  column index: ci * L_in  + j     (PyTorch (C, L) row-major flatten)
    Output column index: co * L_out + l     (same convention -> matches view())

    NOTE: the band is O(L^2) and only ~K/L_in dense; for long sequences
    replace it with K shifted (C_in x C_out) matmuls or tile its K axis on a
    reduction grid dim (resident weights would hit v7x's 64 MiB VMEM first).
    """
    C_out, C_in, K = w_eff.shape
    L_out = L_in - K + 1
    big = np.zeros((C_in, L_in, C_out, L_out), np.float32)
    for k in range(K):
        for l in range(L_out):
            big[:, l + k, :, l] = w_eff[:, :, k].T
    return big.reshape(C_in * L_in, C_out * L_out)


def _pad2d(a, rows, cols):
    out = np.zeros((rows, cols), np.float32)
    out[: a.shape[0], : a.shape[1]] = a
    return out


def prepare_params(raw, in_dim):
    """Fold BN (eval), unroll convs into banded matmuls, lane-pad, cast bf16.

    Returns (weights_bf16, biases_f32, out_dim_unpadded).
    """
    w_c1 = np.asarray(raw["w_c1"], np.float32)
    w_c2 = np.asarray(raw["w_c2"], np.float32)
    K = w_c1.shape[2]
    L1 = in_dim - K + 1
    L2 = L1 - K + 1

    s1, sh1 = _fold_bn(raw["b_c1"], *raw["bn_c1"])
    W1 = _conv_as_band_matrix(w_c1 * s1[:, None, None], in_dim)   # (P*L, C1*L1)
    b1 = np.repeat(sh1, L1)[None, :]

    s2, sh2 = _fold_bn(raw["b_c2"], *raw["bn_c2"])
    W2 = _conv_as_band_matrix(w_c2 * s2[:, None, None], L1)       # (C1*L1, C2*L2)
    b2 = np.repeat(sh2, L2)[None, :]

    s3, sh3 = _fold_bn(raw["b_l1"], *raw["bn_l1"])
    Wl1 = (np.asarray(raw["w_l1"], np.float32) * s3[:, None]).T   # (dnn_dim, n1)
    bl1 = sh3[None, :]

    s4, sh4 = _fold_bn(raw["b_l2"], *raw["bn_l2"])
    Wl2 = (np.asarray(raw["w_l2"], np.float32) * s4[:, None]).T   # (n1, n2)
    bl2 = sh4[None, :]

    Wl3 = np.asarray(raw["w_l3"], np.float32).T                   # (n2, out_dim)
    bl3 = np.asarray(raw["b_l3"], np.float32)[None, :]

    out_dim = Wl3.shape[1]

    # Lane padding: pad each layer's N and the next layer's K with zeros.
    # First-layer K stays at P*L_in (x block uses the full array extent, so
    # no host-side pad of x -- it is the only per-step HBM stream).
    ws = (W1, W2, Wl1, Wl2, Wl3)
    bs = (b1, b2, bl1, bl2, bl3)
    Kx = W1.shape[0]
    Np = [_pad_dim(w.shape[1]) for w in ws]
    Kp = [Kx, Np[0], Np[1], Np[2], Np[3]]

    weights = tuple(jnp.asarray(_pad2d(w, k, n), dtype=jnp.bfloat16)
                    for w, k, n in zip(ws, Kp, Np))
    biases = tuple(jnp.asarray(_pad2d(b, 1, n), dtype=jnp.float32)
                   for b, n in zip(bs, Np))
    return weights, biases, out_dim


# ----------------------------------------------------------------------------
# Forward wrapper
# ----------------------------------------------------------------------------
def _choose_tm(B):
    # >=2 grid steps whenever B allows (lets v7x's two TensorCores split the
    # "parallel" batch axis) while keeping padded rows minimal; sublane (8)
    # aligned; capped at 512 rows.
    return max(8, min(_MAX_TM, _round_up((B + 1) // 2, 8)))


def _bf16_tanh_supported():
    try:
        kind = jax.devices()[0].device_kind.lower()
    except Exception:
        return False
    # v2-v5 have no bf16 EUP/VPU; keep tanh in f32 there.
    return not any(s in kind for s in ("v2", "v3", "v4", "v5"))


@partial(jax.jit, static_argnames=("out_dim",))
def cnn1d_forward(x, weights, biases, *, out_dim):
    B, P, L_in = x.shape
    W1, W2, Wl1, Wl2, Wl3 = weights
    b1, b2, bl1, bl2, bl3 = biases
    Kx = W1.shape[0]
    assert P * L_in == Kx
    Nout = Wl3.shape[1]                      # lane-padded output width

    # Free row-major reshape (no transpose, no extra HBM pass).
    x2 = x.reshape(B, Kx)

    TM = _choose_tm(B)
    Bp = _round_up(B, TM)
    if Bp != B:
        x2 = jnp.pad(x2, ((0, Bp - B), (0, 0)))
    grid = (Bp // TM,)

    # Resident, single-buffered VMEM operands (whole array, no blocking).
    res = pl.BlockSpec(memory_space=pltpu.MemorySpace.VMEM)

    # VMEM budget: x/out tiles are double-buffered by the pipeline; weights
    # and biases are resident once; plus rough live-intermediate slack.
    itemsize = x2.dtype.itemsize
    w_bytes = sum(int(w.size) * 2 for w in weights)
    b_bytes = sum(int(b.size) * 4 for b in biases)
    n_dims = [w.shape[1] for w in weights]
    act_bytes = 2 * TM * max(n_dims) * 4
    vmem_needed = int(1.5 * (2 * TM * (Kx * itemsize + Nout * 4)
                             + w_bytes + b_bytes + act_bytes))
    cp = dict(dimension_semantics=("parallel",))
    if vmem_needed > (16 << 20):             # only raise past v5e's scoped default
        cp["vmem_limit_bytes"] = min(vmem_needed, 64 << 20)

    flops = 2 * Bp * sum(k * n for k, n in zip([Kx] + n_dims[:-1], n_dims))
    cost = pl.CostEstimate(
        flops=flops,
        transcendentals=Bp * sum(n_dims[:-1]),          # four tanh layers
        bytes_accessed=Bp * (Kx * itemsize + Nout * 4) + w_bytes + b_bytes,
    )

    out = pl.pallas_call(
        _make_kernel(_bf16_tanh_supported()),
        out_shape=jax.ShapeDtypeStruct((Bp, Nout), jnp.float32),
        grid=grid,
        in_specs=[
            pl.BlockSpec((TM, Kx), lambda i: (i, 0)),   # x tile (pipelined)
            res, res,    # W1, b1
            res, res,    # W2, b2
            res, res,    # Wl1, bl1
            res, res,    # Wl2, bl2
            res, res,    # Wl3, bl3
        ],
        out_specs=pl.BlockSpec((TM, Nout), lambda i: (i, 0)),
        compiler_params=pltpu.CompilerParams(**cp),
        cost_estimate=cost,
    )(x2, W1, b1, W2, b2, Wl1, bl1, Wl2, bl2, Wl3, bl3)
    return out[:B, :out_dim]


# ----------------------------------------------------------------------------
# Raw (PyTorch-convention) parameters + pure-JAX reference
# ----------------------------------------------------------------------------
def init_raw_params(key, phone_num, in_dim, c1, c2, n1, n2, out_dim, kernel_size=8):
    L1 = in_dim - kernel_size + 1
    L2 = L1 - kernel_size + 1
    assert L2 >= 1, "in_dim too small for two valid k=8 convolutions"
    dnn_dim = L2 * c2
    keys = iter(jax.random.split(key, 16))

    def conv_init(k, cout, cin, ks):
        bound = 1.0 / math.sqrt(cin * ks)
        kw, kb = jax.random.split(k)
        w = jax.random.uniform(kw, (cout, cin, ks), jnp.float32, -bound, bound)
        b = jax.random.uniform(kb, (cout,), jnp.float32, -bound, bound)
        return w, b

    def lin_init(k, fout, fin):
        bound = 1.0 / math.sqrt(fin)
        kw, kb = jax.random.split(k)
        w = jax.random.uniform(kw, (fout, fin), jnp.float32, -bound, bound)
        b = jax.random.uniform(kb, (fout,), jnp.float32, -bound, bound)
        return w, b

    def bn_init(k, c):
        k1, k2, k3, k4 = jax.random.split(k, 4)
        gamma = jax.random.uniform(k1, (c,), jnp.float32, 0.5, 1.5)
        beta = jax.random.uniform(k2, (c,), jnp.float32, -0.3, 0.3)
        mean = jax.random.uniform(k3, (c,), jnp.float32, -0.5, 0.5)
        var = jax.random.uniform(k4, (c,), jnp.float32, 0.5, 1.5)
        return gamma, beta, mean, var

    p = {}
    p["w_c1"], p["b_c1"] = conv_init(next(keys), c1, phone_num, kernel_size)
    p["bn_c1"] = bn_init(next(keys), c1)
    p["w_c2"], p["b_c2"] = conv_init(next(keys), c2, c1, kernel_size)
    p["bn_c2"] = bn_init(next(keys), c2)
    p["w_l1"], p["b_l1"] = lin_init(next(keys), n1, dnn_dim)
    p["bn_l1"] = bn_init(next(keys), n1)
    p["w_l2"], p["b_l2"] = lin_init(next(keys), n2, n1)
    p["bn_l2"] = bn_init(next(keys), n2)
    p["w_l3"], p["b_l3"] = lin_init(next(keys), out_dim, n2)
    return p


def _conv1d_valid(x, w, b):
    K = w.shape[2]
    L_out = x.shape[2] - K + 1
    cols = jnp.stack([x[:, :, l:l + K] for l in range(L_out)], axis=1)  # (B,Lo,Ci,K)
    return jnp.einsum("blck,ock->bol", cols, w) + b[None, :, None]


def _bn_eval(x, gamma, beta, mean, var, eps=_BN_EPS):
    shape = (1, -1, 1) if x.ndim == 3 else (1, -1)
    scale = gamma / jnp.sqrt(var + eps)
    return (x - mean.reshape(shape)) * scale.reshape(shape) + beta.reshape(shape)


def _reference(x, p):
    """Pure-JAX f32 replica of the PyTorch forward (BN in eval mode)."""
    h = jnp.tanh(_bn_eval(_conv1d_valid(x, p["w_c1"], p["b_c1"]), *p["bn_c1"]))
    h = jnp.tanh(_bn_eval(_conv1d_valid(h, p["w_c2"], p["b_c2"]), *p["bn_c2"]))
    h = h.reshape(h.shape[0], -1)                       # view(-1, dnn_dim)
    h = jnp.tanh(_bn_eval(h @ p["w_l1"].T + p["b_l1"], *p["bn_l1"]))
    h = jnp.tanh(_bn_eval(h @ p["w_l2"].T + p["b_l2"], *p["bn_l2"]))
    return h @ p["w_l3"].T + p["b_l3"]


if __name__ == "__main__":
    # Small shapes consistent with the module: two k=8 valid convs need in_dim >= 15.
    phone_num, in_dim = 4, 16
    c_hidden_1, c_hidden_2 = 8, 8
    n_hidden_1, n_hidden_2 = 32, 32
    out_dim = 16
    B = 2

    key = jax.random.PRNGKey(0)
    kx, kp = jax.random.split(key)
    x = jax.random.normal(kx, (B, phone_num, in_dim), dtype=jnp.float32)

    raw = init_raw_params(kp, phone_num, in_dim, c_hidden_1, c_hidden_2,
                          n_hidden_1, n_hidden_2, out_dim)
    weights, biases, out_dim_prepared = prepare_params(raw, in_dim)
    assert out_dim_prepared == out_dim

    out = cnn1d_forward(x, weights, biases, out_dim=out_dim)
    jax.block_until_ready(out)

    ref = _reference(x, raw)
    # bf16 MXU operands / bf16 activations with f32 accumulation: loosened
    # tolerance vs the f32 reference.
    assert out.shape == (B, out_dim)
    np.testing.assert_allclose(np.asarray(out), np.asarray(ref), rtol=5e-2, atol=5e-2)

    print("KERNEL_OK")
</pallas_src>

<mosaic_0001>
module attributes {stable_mosaic.version = 11 : i64} {
  func.func @kernel(%arg0: i32, %arg1: memref<8x64xf32, #tpu.memory_space<vmem>>, %arg2: memref<64x128xbf16, #tpu.memory_space<vmem>>, %arg3: memref<1x128xf32, #tpu.memory_space<vmem>>, %arg4: memref<128x128xbf16, #tpu.memory_space<vmem>>, %arg5: memref<1x128xf32, #tpu.memory_space<vmem>>, %arg6: memref<128x128xbf16, #tpu.memory_space<vmem>>, %arg7: memref<1x128xf32, #tpu.memory_space<vmem>>, %arg8: memref<128x128xbf16, #tpu.memory_space<vmem>>, %arg9: memref<1x128xf32, #tpu.memory_space<vmem>>, %arg10: memref<128x128xbf16, #tpu.memory_space<vmem>>, %arg11: memref<1x128xf32, #tpu.memory_space<vmem>>, %arg12: memref<8x128xf32, #tpu.memory_space<vmem>>) attributes {dimension_semantics = [#tpu.dimension_semantics<parallel>], iteration_bounds = array<i64: 1>, scalar_prefetch = 0 : i64, scratch_operands = 0 : i64, tpu.core_type = #tpu.core_type<tc>, window_params = [{transform_indices = @transform_0, window_bounds = array<i64: 8, 64>}, {pipeline_mode = #tpu.pipeline_mode<synchronous>, transform_indices = @transform_1, window_bounds = array<i64: 64, 128>}, {pipeline_mode = #tpu.pipeline_mode<synchronous>, transform_indices = @transform_2, window_bounds = array<i64: 1, 128>}, {pipeline_mode = #tpu.pipeline_mode<synchronous>, transform_indices = @transform_3, window_bounds = array<i64: 128, 128>}, {pipeline_mode = #tpu.pipeline_mode<synchronous>, transform_indices = @transform_4, window_bounds = array<i64: 1, 128>}, {pipeline_mode = #tpu.pipeline_mode<synchronous>, transform_indices = @transform_5, window_bounds = array<i64: 128, 128>}, {pipeline_mode = #tpu.pipeline_mode<synchronous>, transform_indices = @transform_6, window_bounds = array<i64: 1, 128>}, {pipeline_mode = #tpu.pipeline_mode<synchronous>, transform_indices = @transform_7, window_bounds = array<i64: 128, 128>}, {pipeline_mode = #tpu.pipeline_mode<synchronous>, transform_indices = @transform_8, window_bounds = array<i64: 1, 128>}, {pipeline_mode = #tpu.pipeline_mode<synchronous>, transform_indices = @transform_9, window_bounds = array<i64: 128, 128>}, {pipeline_mode = #tpu.pipeline_mode<synchronous>, transform_indices = @transform_10, window_bounds = array<i64: 1, 128>}, {transform_indices = @transform_11, window_bounds = array<i64: 8, 128>}]} {
    %c0 = arith.constant 0 : index
    %c0_0 = arith.constant 0 : index
    %0 = vector.load %arg1[%c0, %c0_0] : memref<8x64xf32, #tpu.memory_space<vmem>>, vector<8x64xf32>
    %1 = arith.truncf %0 : vector<8x64xf32> to vector<8x64xbf16>
    %c0_1 = arith.constant 0 : index
    %c0_2 = arith.constant 0 : index
    %2 = vector.load %arg2[%c0_1, %c0_2] : memref<64x128xbf16, #tpu.memory_space<vmem>>, vector<64x128xbf16>
    %cst = arith.constant dense<0.000000e+00> : vector<8x128xf32>
    %3 = tpu.matmul %1, %2, %cst {dimension_numbers = #tpu.dot_dimension_numbers<[1], [0], [0], [1], [0, 0, 1, 1], [], []>} : vector<8x64xbf16>, vector<64x128xbf16>, vector<8x128xf32> -> vector<8x128xf32>
    %c0_3 = arith.constant 0 : index
    %c0_4 = arith.constant 0 : index
    %4 = vector.load %arg3[%c0_3, %c0_4] : memref<1x128xf32, #tpu.memory_space<vmem>>, vector<1x128xf32>
    %5 = vector.broadcast %4 : vector<1x128xf32> to vector<8x128xf32>
    %6 = arith.addf %3, %5 : vector<8x128xf32>
    %7 = arith.truncf %6 : vector<8x128xf32> to vector<8x128xbf16>
    %8 = math.tanh %7 : vector<8x128xbf16>
    %c0_5 = arith.constant 0 : index
    %c0_6 = arith.constant 0 : index
    %9 = vector.load %arg4[%c0_5, %c0_6] : memref<128x128xbf16, #tpu.memory_space<vmem>>, vector<128x128xbf16>
    %cst_7 = arith.constant dense<0.000000e+00> : vector<8x128xf32>
    %10 = tpu.matmul %8, %9, %cst_7 {dimension_numbers = #tpu.dot_dimension_numbers<[1], [0], [0], [1], [0, 0, 1, 1], [], []>} : vector<8x128xbf16>, vector<128x128xbf16>, vector<8x128xf32> -> vector<8x128xf32>
    %c0_8 = arith.constant 0 : index
    %c0_9 = arith.constant 0 : index
    %11 = vector.load %arg5[%c0_8, %c0_9] : memref<1x128xf32, #tpu.memory_space<vmem>>, vector<1x128xf32>
    %12 = vector.broadcast %11 : vector<1x128xf32> to vector<8x128xf32>
    %13 = arith.addf %10, %12 : vector<8x128xf32>
    %14 = arith.truncf %13 : vector<8x128xf32> to vector<8x128xbf16>
    %15 = math.tanh %14 : vector<8x128xbf16>
    %c0_10 = arith.constant 0 : index
    %c0_11 = arith.constant 0 : index
    %16 = vector.load %arg6[%c0_10, %c0_11] : memref<128x128xbf16, #tpu.memory_space<vmem>>, vector<128x128xbf16>
    %cst_12 = arith.constant dense<0.000000e+00> : vector<8x128xf32>
    %17 = tpu.matmul %15, %16, %cst_12 {dimension_numbers = #tpu.dot_dimension_numbers<[1], [0], [0], [1], [0, 0, 1, 1], [], []>} : vector<8x128xbf16>, vector<128x128xbf16>, vector<8x128xf32> -> vector<8x128xf32>
    %c0_13 = arith.constant 0 : index
    %c0_14 = arith.constant 0 : index
    %18 = vector.load %arg7[%c0_13, %c0_14] : memref<1x128xf32, #tpu.memory_space<vmem>>, vector<1x128xf32>
    %19 = vector.broadcast %18 : vector<1x128xf32> to vector<8x128xf32>
    %20 = arith.addf %17, %19 : vector<8x128xf32>
    %21 = arith.truncf %20 : vector<8x128xf32> to vector<8x128xbf16>
    %22 = math.tanh %21 : vector<8x128xbf16>
    %c0_15 = arith.constant 0 : index
    %c0_16 = arith.constant 0 : index
    %23 = vector.load %arg8[%c0_15, %c0_16] : memref<128x128xbf16, #tpu.memory_space<vmem>>, vector<128x128xbf16>
    %cst_17 = arith.constant dense<0.000000e+00> : vector<8x128xf32>
    %24 = tpu.matmul %22, %23, %cst_17 {dimension_numbers = #tpu.dot_dimension_numbers<[1], [0], [0], [1], [0, 0, 1, 1], [], []>} : vector<8x128xbf16>, vector<128x128xbf16>, vector<8x128xf32> -> vector<8x128xf32>
    %c0_18 = arith.constant 0 : index
    %c0_19 = arith.constant 0 : index
    %25 = vector.load %arg9[%c0_18, %c0_19] : memref<1x128xf32, #tpu.memory_space<vmem>>, vector<1x128xf32>
    %26 = vector.broadcast %25 : vector<1x128xf32> to vector<8x128xf32>
    %27 = arith.addf %24, %26 : vector<8x128xf32>
    %28 = arith.truncf %27 : vector<8x128xf32> to vector<8x128xbf16>
    %29 = math.tanh %28 : vector<8x128xbf16>
    %c0_20 = arith.constant 0 : index
    %c0_21 = arith.constant 0 : index
    %30 = vector.load %arg10[%c0_20, %c0_21] : memref<128x128xbf16, #tpu.memory_space<vmem>>, vector<128x128xbf16>
    %cst_22 = arith.constant dense<0.000000e+00> : vector<8x128xf32>
    %31 = tpu.matmul %29, %30, %cst_22 {dimension_numbers = #tpu.dot_dimension_numbers<[1], [0], [0], [1], [0, 0, 1, 1], [], []>} : vector<8x128xbf16>, vector<128x128xbf16>, vector<8x128xf32> -> vector<8x128xf32>
    %c0_23 = arith.constant 0 : index
    %c0_24 = arith.constant 0 : index
    %32 = vector.load %arg11[%c0_23, %c0_24] : memref<1x128xf32, #tpu.memory_space<vmem>>, vector<1x128xf32>
    %33 = vector.broadcast %32 : vector<1x128xf32> to vector<8x128xf32>
    %34 = arith.addf %31, %33 : vector<8x128xf32>
    %c0_25 = arith.constant 0 : index
    %c0_26 = arith.constant 0 : index
    %35 = vector.load %arg12[%c0_25, %c0_26] : memref<8x128xf32, #tpu.memory_space<vmem>>, vector<8x128xf32>
    tpu.vector_store %arg12[%c0_25, %c0_26], %34 {strides = array<i32>} : memref<8x128xf32, #tpu.memory_space<vmem>>, vector<8x128xf32>,
    return
  }
  func.func @transform_0(%arg0: i32) -> (i32, i32) {
    %c0_i32 = arith.constant 0 : i32
    %c0_i32_0 = arith.constant 0 : i32
    return %arg0, %c0_i32 : i32, i32
  }
  func.func @transform_1(%arg0: i32) -> (i32, i32) {
    %c0_i32 = arith.constant 0 : i32
    %c0_i32_0 = arith.constant 0 : i32
    %c0_i32_1 = arith.constant 0 : i32
    return %c0_i32, %c0_i32_0 : i32, i32
  }
  func.func @transform_2(%arg0: i32) -> (i32, i32) {
    %c0_i32 = arith.constant 0 : i32
    %c0_i32_0 = arith.constant 0 : i32
    %c0_i32_1 = arith.constant 0 : i32
    return %c0_i32, %c0_i32_0 : i32, i32
  }
  func.func @transform_3(%arg0: i32) -> (i32, i32) {
    %c0_i32 = arith.constant 0 : i32
    %c0_i32_0 = arith.constant 0 : i32
    %c0_i32_1 = arith.constant 0 : i32
    return %c0_i32, %c0_i32_0 : i32, i32
  }
  func.func @transform_4(%arg0: i32) -> (i32, i32) {
    %c0_i32 = arith.constant 0 : i32
    %c0_i32_0 = arith.constant 0 : i32
    %c0_i32_1 = arith.constant 0 : i32
    return %c0_i32, %c0_i32_0 : i32, i32
  }
  func.func @transform_5(%arg0: i32) -> (i32, i32) {
    %c0_i32 = arith.constant 0 : i32
    %c0_i32_0 = arith.constant 0 : i32
    %c0_i32_1 = arith.constant 0 : i32
    return %c0_i32, %c0_i32_0 : i32, i32
  }
  func.func @transform_6(%arg0: i32) -> (i32, i32) {
    %c0_i32 = arith.constant 0 : i32
    %c0_i32_0 = arith.constant 0 : i32
    %c0_i32_1 = arith.constant 0 : i32
    return %c0_i32, %c0_i32_0 : i32, i32
  }
  func.func @transform_7(%arg0: i32) -> (i32, i32) {
    %c0_i32 = arith.constant 0 : i32
    %c0_i32_0 = arith.constant 0 : i32
    %c0_i32_1 = arith.constant 0 : i32
    return %c0_i32, %c0_i32_0 : i32, i32
  }
  func.func @transform_8(%arg0: i32) -> (i32, i32) {
    %c0_i32 = arith.constant 0 : i32
    %c0_i32_0 = arith.constant 0 : i32
    %c0_i32_1 = arith.constant 0 : i32
    return %c0_i32, %c0_i32_0 : i32, i32
  }
  func.func @transform_9(%arg0: i32) -> (i32, i32) {
    %c0_i32 = arith.constant 0 : i32
    %c0_i32_0 = arith.constant 0 : i32
    %c0_i32_1 = arith.constant 0 : i32
    return %c0_i32, %c0_i32_0 : i32, i32
  }
  func.func @transform_10(%arg0: i32) -> (i32, i32) {
    %c0_i32 = arith.constant 0 : i32
    %c0_i32_0 = arith.constant 0 : i32
    %c0_i32_1 = arith.constant 0 : i32
    return %c0_i32, %c0_i32_0 : i32, i32
  }
  func.func @transform_11(%arg0: i32) -> (i32, i32) {
    %c0_i32 = arith.constant 0 : i32
    %c0_i32_0 = arith.constant 0 : i32
    return %arg0, %c0_i32 : i32, i32
  }
}

</mosaic_0001>

<llo_original>
// kernel: cnn1d_forward.1
$region0: #{cnn1d_forward.1}
  #allocation0 [shape = 'u32[]', space=smem, size = 0x4, offset = 0x4, fixed_abs, tag = 'smem constant byte address 0x4 - core index']
  #allocation1 [shape = 'u32[72,128]{1,0:T(1,128)}', space=vmem, size = 0x9000, scoped, tag = 'internal scratch']
  %s0 = inlined_call_operand.vmem [shape: f32[8,64], index: 0, kind: input, shape index: {}]
  %s1 = inlined_call_operand.hbm [shape: bf16[64,128], index: 1, kind: input, shape index: {}]
  %s2 = inlined_call_operand.vmem [shape: f32[1,128], index: 2, kind: input, shape index: {}]
  %s3 = inlined_call_operand.hbm [shape: bf16[128,128], index: 3, kind: input, shape index: {}]
  %s4 = inlined_call_operand.vmem [shape: f32[1,128], index: 4, kind: input, shape index: {}]
  %s5 = inlined_call_operand.hbm [shape: bf16[128,128], index: 5, kind: input, shape index: {}]
  %s6 = inlined_call_operand.vmem [shape: f32[1,128], index: 6, kind: input, shape index: {}]
  %s7 = inlined_call_operand.hbm [shape: bf16[128,128], index: 7, kind: input, shape index: {}]
  %s8 = inlined_call_operand.vmem [shape: f32[1,128], index: 8, kind: input, shape index: {}]
  %s9 = inlined_call_operand.hbm [shape: bf16[128,128], index: 9, kind: input, shape index: {}]
  %s10 = inlined_call_operand.vmem [shape: f32[1,128], index: 10, kind: input, shape index: {}]
  %s11 = inlined_call_operand.vmem [shape: f32[8,128], index: 11, kind: output, shape index: {}]
  %s12 = sld [smem:[#allocation0]]
  $region74: #{cnn1d_forward.1} parent=0
    _
  %s14 = ssub.s32 1, %s12
  %s15 = scalar_select 0, %s14, %s12
  $region1: #{cnn1d_forward.1} parent=0
    #allocation2 [shape = 'u8[16384]{0}', space=vmem, size = 0x4000, scoped, tag = 'input window, operand 1, single buffered']
    #allocation3 [shape = 's32[1]{0}', space=sflag, size = 0x4, scoped, tag = 'scoped memory for cnn1d_forward.1']
    #allocation4 [shape = 'u8[32768]{0}', space=vmem, size = 0x8000, scoped, tag = 'input window, operand 3, single buffered']
    #allocation5 [shape = 's32[1]{0}', space=sflag, size = 0x4, scoped, tag = 'scoped memory for cnn1d_forward.1']
    #allocation6 [shape = 'u8[32768]{0}', space=vmem, size = 0x8000, scoped, tag = 'input window, operand 5, single buffered']
    #allocation7 [shape = 'u8[32768]{0}', space=vmem, size = 0x8000, scoped, tag = 'input window, operand 7, single buffered']
    #allocation8 [shape = 's32[1]{0}', space=sflag, size = 0x4, scoped, tag = 'scoped memory for cnn1d_forward.1']
    #allocation9 [shape = 'u8[32768]{0}', space=vmem, size = 0x8000, scoped, tag = 'input window, operand 9, single buffered']
    %16 = vsyncpa [#allocation3], 0
    %17 = vsyncpa [#allocation5], 0
    %18 = vsyncpa [#allocation8], 0
    // Predicated region
    $region2: #{cnn1d_forward.1} parent=1 // pred_check
      _
    $region3: #{cnn1d_forward.1} parent=1 // pred_check_branch
      %20 = sbr.rel (0) target = $region5
    $region4: #{cnn1d_forward.1} parent=1 // pred_region
      _
    $region5: #{cnn1d_forward.1} parent=1 // pred_fallthru
      _
    // Predicated region
    $region6: #{cnn1d_forward.1} parent=1 // pred_check
      _
    $region7: #{cnn1d_forward.1} parent=1 // pred_check_branch
      %22 = sbr.rel (0) target = $region9
    $region8: #{cnn1d_forward.1} parent=1 // pred_region
      %24 = vsyncadd [#allocation3], 0
      %s25 = sshll.u32 %s1, 4
      %s26 = int_to_ptr.hbm [resolvable:$true] %s25
      %s27 = sshll.u32 [#allocation2], 4
      %s28 = int_to_ptr.vmem [resolvable:$true] %s27
      %33 = dma.hbm_to_vmem [thread:$0]  %s26, 512, %s28, [#allocation3], 64, 64, 4
    $region9: #{cnn1d_forward.1} parent=1 // pred_fallthru
      _
    // Predicated region
    $region10: #{cnn1d_forward.1} parent=1 // pred_check
      _
    $region11: #{cnn1d_forward.1} parent=1 // pred_check_branch
      %35 = sbr.rel (0) target = $region13
    $region12: #{cnn1d_forward.1} parent=1 // pred_region
      _
    $region13: #{cnn1d_forward.1} parent=1 // pred_fallthru
      _
    // Predicated region
    $region14: #{cnn1d_forward.1} parent=1 // pred_check
      _
    $region15: #{cnn1d_forward.1} parent=1 // pred_check_branch
      %37 = sbr.rel (0) target = $region17
    $region16: #{cnn1d_forward.1} parent=1 // pred_region
      %39 = vsyncadd [#allocation5], 0
      %s40 = sshll.u32 %s3, 4
      %s41 = int_to_ptr.hbm [resolvable:$true] %s40
      %s42 = sshll.u32 [#allocation4], 4
      %s43 = int_to_ptr.vmem [resolvable:$true] %s42
      %48 = dma.hbm_to_vmem [thread:$0]  %s41, 1024, %s43, [#allocation5], 64, 64, 4
    $region17: #{cnn1d_forward.1} parent=1 // pred_fallthru
      _
    // Predicated region
    $region18: #{cnn1d_forward.1} parent=1 // pred_check
      _
    $region19: #{cnn1d_forward.1} parent=1 // pred_check_branch
      %50 = sbr.rel (0) target = $region21
    $region20: #{cnn1d_forward.1} parent=1 // pred_region
      _
    $region21: #{cnn1d_forward.1} parent=1 // pred_fallthru
      _
    // Predicated region
    $region22: #{cnn1d_forward.1} parent=1 // pred_check
      _
    $region23: #{cnn1d_forward.1} parent=1 // pred_check_branch
      %52 = sbr.rel (0) target = $region25
    $region24: #{cnn1d_forward.1} parent=1 // pred_region
      %54 = vsyncadd [#allocation5], 0
      %s55 = sshll.u32 %s5, 4
      %s56 = int_to_ptr.hbm [resolvable:$true] %s55
      %s57 = sshll.u32 [#allocation6], 4
      %s58 = int_to_ptr.vmem [resolvable:$true] %s57
      %63 = dma.hbm_to_vmem [thread:$0]  %s56, 1024, %s58, [#allocation5], 64, 64, 4
    $region25: #{cnn1d_forward.1} parent=1 // pred_fallthru
      _
    // Predicated region
    $region26: #{cnn1d_forward.1} parent=1 // pred_check
      _
    $region27: #{cnn1d_forward.1} parent=1 // pred_check_branch
      %65 = sbr.rel (0) target = $region29
    $region28: #{cnn1d_forward.1} parent=1 // pred_region
      _
    $region29: #{cnn1d_forward.1} parent=1 // pred_fallthru
      _
    // Predicated region
    $region30: #{cnn1d_forward.1} parent=1 // pred_check
      _
    $region31: #{cnn1d_forward.1} parent=1 // pred_check_branch
      %67 = sbr.rel (0) target = $region33
    $region32: #{cnn1d_forward.1} parent=1 // pred_region
      %69 = vsyncadd [#allocation8], 0
      %s70 = sshll.u32 %s7, 4
      %s71 = int_to_ptr.hbm [resolvable:$true] %s70
      %s72 = sshll.u32 [#allocation7], 4
      %s73 = int_to_ptr.vmem [resolvable:$true] %s72
      %78 = dma.hbm_to_vmem [thread:$0]  %s71, 1024, %s73, [#allocation8], 64, 64, 4
    $region33: #{cnn1d_forward.1} parent=1 // pred_fallthru
      _
    // Predicated region
    $region34: #{cnn1d_forward.1} parent=1 // pred_check
      _
    $region35: #{cnn1d_forward.1} parent=1 // pred_check_branch
      %80 = sbr.rel (0) target = $region37
    $region36: #{cnn1d_forward.1} parent=1 // pred_region
      _
    $region37: #{cnn1d_forward.1} parent=1 // pred_fallthru
      _
    // Predicated region
    $region38: #{cnn1d_forward.1} parent=1 // pred_check
      _
    $region39: #{cnn1d_forward.1} parent=1 // pred_check_branch
      %82 = sbr.rel (0) target = $region41
    $region40: #{cnn1d_forward.1} parent=1 // pred_region
      %84 = vsyncadd [#allocation8], 0
      %s85 = sshll.u32 %s9, 4
      %s86 = int_to_ptr.hbm [resolvable:$true] %s85
      %s87 = sshll.u32 [#allocation9], 4
      %s88 = int_to_ptr.vmem [resolvable:$true] %s87
      %93 = dma.hbm_to_vmem [thread:$0]  %s86, 1024, %s88, [#allocation8], 64, 64, 4
    $region41: #{cnn1d_forward.1} parent=1 // pred_fallthru
      _
    // Predicated region
    $region42: #{cnn1d_forward.1} parent=1 // pred_check
      _
    $region43: #{cnn1d_forward.1} parent=1 // pred_check_branch
      %95 = sbr.rel (0) target = $region45
    $region44: #{cnn1d_forward.1} parent=1 // pred_region
      _
    $region45: #{cnn1d_forward.1} parent=1 // pred_fallthru
      _
    // Predicated region
    $region46: #{cnn1d_forward.1} parent=1 // pred_check
      _
    $region47: #{cnn1d_forward.1} parent=1 // pred_check_branch
      %97 = sbr.rel (0) target = $region49
    $region48: #{cnn1d_forward.1} parent=1 // pred_region
      %99 = dma.done [#allocation3], 512
    $region49: #{cnn1d_forward.1} parent=1 // pred_fallthru
      _
    // Predicated region
    $region50: #{cnn1d_forward.1} parent=1 // pred_check
      _
    $region51: #{cnn1d_forward.1} parent=1 // pred_check_branch
      %101 = sbr.rel (0) target = $region53
    $region52: #{cnn1d_forward.1} parent=1 // pred_region
      %103 = dma.done [#allocation5], 1024
    $region53: #{cnn1d_forward.1} parent=1 // pred_fallthru
      _
    // Predicated region
    $region54: #{cnn1d_forward.1} parent=1 // pred_check
      _
    $region55: #{cnn1d_forward.1} parent=1 // pred_check_branch
      %105 = sbr.rel (0) target = $region57
    $region56: #{cnn1d_forward.1} parent=1 // pred_region
      %107 = dma.done [#allocation5], 1024
    $region57: #{cnn1d_forward.1} parent=1 // pred_fallthru
      _
    // Predicated region
    $region58: #{cnn1d_forward.1} parent=1 // pred_check
      _
    $region59: #{cnn1d_forward.1} parent=1 // pred_check_branch
      %109 = sbr.rel (0) target = $region61
    $region60: #{cnn1d_forward.1} parent=1 // pred_region
      %111 = dma.done [#allocation8], 1024
    $region61: #{cnn1d_forward.1} parent=1 // pred_fallthru
      _
    // Predicated region
    $region62: #{cnn1d_forward.1} parent=1 // pred_check
      _
    $region63: #{cnn1d_forward.1} parent=1 // pred_check_branch
      %113 = sbr.rel (0) target = $region65
    $region64: #{cnn1d_forward.1} parent=1 // pred_region
      %115 = dma.done [#allocation8], 1024
    $region65: #{cnn1d_forward.1} parent=1 // pred_fallthru
      _
    %v117 = vld [vmem:[%s0] sm:$0xff]
    %v118 = vpack.c.bf16 %v117, %v117
    %v119 = vld [vmem:[#allocation2] sm:$0xf]
    %v120 = vld [vmem:[#allocation2 + $0x4] sm:$0xf]
    %v121 = vld [vmem:[#allocation2 + $0x8] sm:$0xf]
    %v122 = vld [vmem:[#allocation2 + $0xc] sm:$0xf]
    %v123 = vld [vmem:[#allocation2 + $0x10] sm:$0xf]
    %v124 = vld [vmem:[#allocation2 + $0x14] sm:$0xf]
    %v125 = vld [vmem:[#allocation2 + $0x18] sm:$0xf]
    %v126 = vld [vmem:[#allocation2 + $0x1c] sm:$0xf]
    %v127 = vld [vmem:[%s2] sm:$0x1]
    %v129 = vperm.slane %v127, 0
    %v139 = vunpack.c.l.b16 %v119
    %v140 = vunpack.c.l.b16 %v120
    %v141 = vunpack.c.l.b16 %v121
    %v142 = vunpack.c.l.b16 %v122
    %v143 = vunpack.c.l.b16 %v123
    %v144 = vunpack.c.l.b16 %v124
    %v145 = vunpack.c.l.b16 %v125
    %v146 = vunpack.c.l.b16 %v126
    %v147 = vpack.c.b16 %v140, %v139
    %v148 = vpack.c.b16 %v142, %v141
    %v149 = vpack.c.b16 %v144, %v143
    %v150 = vpack.c.b16 %v146, %v145
    %vm155 = vcmask 523264
    %v157 = vsel %vm155, %v118, 0
    %159 = vmatpush.bf16.msra.mxu0 0
    %160 = vmatpush.bf16.msra.mxu0 0
    %161 = vmatpush.bf16.msra.mxu0 0
    %162 = vmatpush.bf16.msra.mxu0 0
    %163 = vmatpush.bf16.msra.mxu0 %v150
    %164 = vmatpush.bf16.msra.mxu0 %v149
    %165 = vmatpush.bf16.msra.mxu0 %v148
    %166 = vmatpush.bf16.msra.mxu0 %v147
    %167 = vmatmul.bf16.gmra.mxu0 %v157
    %v168 = vpop.f32.mrf.mxu0
    %v169 = vadd.f32 %v129, %v168
    %v170 = vpop.f32.mrf.mxu0
    %171 = vdwg.mxu0
    %v172 = vpack.c.bf16 %v169, %v169
    %v173 = vunpack.c.l.bf16 %v172
    %v174 = vtanh.pop %v173
    %v175 = vpack.c.bf16 %v174, %v174
    %v176 = vld [vmem:[#allocation4] sm:$0xf]
    %v177 = vld [vmem:[#allocation4 + $0x4] sm:$0xf]
    %v178 = vld [vmem:[#allocation4 + $0x8] sm:$0xf]
    %v179 = vld [vmem:[#allocation4 + $0xc] sm:$0xf]
    %v180 = vld [vmem:[#allocation4 + $0x10] sm:$0xf]
    %v181 = vld [vmem:[#allocation4 + $0x14] sm:$0xf]
    %v182 = vld [vmem:[#allocation4 + $0x18] sm:$0xf]
    %v183 = vld [vmem:[#allocation4 + $0x1c] sm:$0xf]
    %v184 = vld [vmem:[#allocation4 + $0x20] sm:$0xf]
    %v185 = vld [vmem:[#allocation4 + $0x24] sm:$0xf]
    %v186 = vld [vmem:[#allocation4 + $0x28] sm:$0xf]
    %v187 = vld [vmem:[#allocation4 + $0x2c] sm:$0xf]
    %v188 = vld [vmem:[#allocation4 + $0x30] sm:$0xf]
    %v189 = vld [vmem:[#allocation4 + $0x34] sm:$0xf]
    %v190 = vld [vmem:[#allocation4 + $0x38] sm:$0xf]
    %v191 = vld [vmem:[#allocation4 + $0x3c] sm:$0xf]
    %v192 = vld [vmem:[%s4] sm:$0x1]
    %v194 = vperm.slane %v192, 0
    %v212 = vunpack.c.l.b16 %v176
    %v213 = vunpack.c.l.b16 %v177
    %v214 = vunpack.c.l.b16 %v178
    %v215 = vunpack.c.l.b16 %v179
    %v216 = vunpack.c.l.b16 %v180
    %v217 = vunpack.c.l.b16 %v181
    %v218 = vunpack.c.l.b16 %v182
    %v219 = vunpack.c.l.b16 %v183
    %v220 = vunpack.c.l.b16 %v184
    %v221 = vunpack.c.l.b16 %v185
    %v222 = vunpack.c.l.b16 %v186
    %v223 = vunpack.c.l.b16 %v187
    %v224 = vunpack.c.l.b16 %v188
    %v225 = vunpack.c.l.b16 %v189
    %v226 = vunpack.c.l.b16 %v190
    %v227 = vunpack.c.l.b16 %v191
    %v228 = vpack.c.b16 %v213, %v212
    %v229 = vpack.c.b16 %v215, %v214
    %v230 = vpack.c.b16 %v217, %v216
    %v231 = vpack.c.b16 %v219, %v218
    %v232 = vpack.c.b16 %v221, %v220
    %v233 = vpack.c.b16 %v223, %v222
    %v234 = vpack.c.b16 %v225, %v224
    %v235 = vpack.c.b16 %v227, %v226
    %244 = vmatpush.bf16.msra.mxu0 %v235
    %245 = vmatpush.bf16.msra.mxu0 %v234
    %246 = vmatpush.bf16.msra.mxu0 %v233
    %247 = vmatpush.bf16.msra.mxu0 %v232
    %248 = vmatpush.bf16.msra.mxu0 %v231
    %249 = vmatpush.bf16.msra.mxu0 %v230
    %250 = vmatpush.bf16.msra.mxu0 %v229
    %251 = vmatpush.bf16.msra.mxu0 %v228
    %252 = vmatmul.bf16.gmra.mxu0 %v175
    %v253 = vpop.f32.mrf.mxu0
    %v254 = vadd.f32 %v194, %v253
    %v255 = vpop.f32.mrf.mxu0
    %256 = vdwg.mxu0
    %v257 = vpack.c.bf16 %v254, %v254
    %v258 = vunpack.c.l.bf16 %v257
    %v259 = vtanh.pop %v258
    %v260 = vpack.c.bf16 %v259, %v259
    %v261 = vld [vmem:[#allocation6] sm:$0xf]
    %v262 = vld [vmem:[#allocation6 + $0x4] sm:$0xf]
    %v263 = vld [vmem:[#allocation6 + $0x8] sm:$0xf]
    %v264 = vld [vmem:[#allocation6 + $0xc] sm:$0xf]
    %v265 = vld [vmem:[#allocation6 + $0x10] sm:$0xf]
    %v266 = vld [vmem:[#allocation6 + $0x14] sm:$0xf]
    %v267 = vld [vmem:[#allocation6 + $0x18] sm:$0xf]
    %v268 = vld [vmem:[#allocation6 + $0x1c] sm:$0xf]
    %v269 = vld [vmem:[#allocation6 + $0x20] sm:$0xf]
    %v270 = vld [vmem:[#allocation6 + $0x24] sm:$0xf]
    %v271 = vld [vmem:[#allocation6 + $0x28] sm:$0xf]
    %v272 = vld [vmem:[#allocation6 + $0x2c] sm:$0xf]
    %v273 = vld [vmem:[#allocation6 + $0x30] sm:$0xf]
    %v274 = vld [vmem:[#allocation6 + $0x34] sm:$0xf]
    %v275 = vld [vmem:[#allocation6 + $0x38] sm:$0xf]
    %v276 = vld [vmem:[#allocation6 + $0x3c] sm:$0xf]
    %v277 = vld [vmem:[%s6] sm:$0x1]
    %v279 = vperm.slane %v277, 0
    %v297 = vunpack.c.l.b16 %v261
    %v298 = vunpack.c.l.b16 %v262
    %v299 = vunpack.c.l.b16 %v263
    %v300 = vunpack.c.l.b16 %v264
    %v301 = vunpack.c.l.b16 %v265
    %v302 = vunpack.c.l.b16 %v266
    %v303 = vunpack.c.l.b16 %v267
    %v304 = vunpack.c.l.b16 %v268
    %v305 = vunpack.c.l.b16 %v269
    %v306 = vunpack.c.l.b16 %v270
    %v307 = vunpack.c.l.b16 %v271
    %v308 = vunpack.c.l.b16 %v272
    %v309 = vunpack.c.l.b16 %v273
    %v310 = vunpack.c.l.b16 %v274
    %v311 = vunpack.c.l.b16 %v275
    %v312 = vunpack.c.l.b16 %v276
    %v313 = vpack.c.b16 %v298, %v297
    %v314 = vpack.c.b16 %v300, %v299
    %v315 = vpack.c.b16 %v302, %v301
    %v316 = vpack.c.b16 %v304, %v303
    %v317 = vpack.c.b16 %v306, %v305
    %v318 = vpack.c.b16 %v308, %v307
    %v319 = vpack.c.b16 %v310, %v309
    %v320 = vpack.c.b16 %v312, %v311
    %329 = vmatpush.bf16.msra.mxu0 %v320
    %330 = vmatpush.bf16.msra.mxu0 %v319
    %331 = vmatpush.bf16.msra.mxu0 %v318
    %332 = vmatpush.bf16.msra.mxu0 %v317
    %333 = vmatpush.bf16.msra.mxu0 %v316
    %334 = vmatpush.bf16.msra.mxu0 %v315
    %335 = vmatpush.bf16.msra.mxu0 %v314
    %336 = vmatpush.bf16.msra.mxu0 %v313
    %337 = vmatmul.bf16.gmra.mxu0 %v260
    %v338 = vpop.f32.mrf.mxu0
    %v339 = vadd.f32 %v279, %v338
    %v340 = vpop.f32.mrf.mxu0
    %341 = vdwg.mxu0
    %v342 = vpack.c.bf16 %v339, %v339
    %v343 = vunpack.c.l.bf16 %v342
    %v344 = vtanh.pop %v343
    %v345 = vpack.c.bf16 %v344, %v344
    %v346 = vld [vmem:[#allocation7] sm:$0xf]
    %v347 = vld [vmem:[#allocation7 + $0x4] sm:$0xf]
    %v348 = vld [vmem:[#allocation7 + $0x8] sm:$0xf]
    %v349 = vld [vmem:[#allocation7 + $0xc] sm:$0xf]
    %v350 = vld [vmem:[#allocation7 + $0x10] sm:$0xf]
    %v351 = vld [vmem:[#allocation7 + $0x14] sm:$0xf]
    %v352 = vld [vmem:[#allocation7 + $0x18] sm:$0xf]
    %v353 = vld [vmem:[#allocation7 + $0x1c] sm:$0xf]
    %v354 = vld [vmem:[#allocation7 + $0x20] sm:$0xf]
    %v355 = vld [vmem:[#allocation7 + $0x24] sm:$0xf]
    %v356 = vld [vmem:[#allocation7 + $0x28] sm:$0xf]
    %v357 = vld [vmem:[#allocation7 + $0x2c] sm:$0xf]
    %v358 = vld [vmem:[#allocation7 + $0x30] sm:$0xf]
    %v359 = vld [vmem:[#allocation7 + $0x34] sm:$0xf]
    %v360 = vld [vmem:[#allocation7 + $0x38] sm:$0xf]
    %v361 = vld [vmem:[#allocation7 + $0x3c] sm:$0xf]
    %v362 = vld [vmem:[%s8] sm:$0x1]
    %v364 = vperm.slane %v362, 0
    %v382 = vunpack.c.l.b16 %v346
    %v383 = vunpack.c.l.b16 %v347
    %v384 = vunpack.c.l.b16 %v348
    %v385 = vunpack.c.l.b16 %v349
    %v386 = vunpack.c.l.b16 %v350
    %v387 = vunpack.c.l.b16 %v351
    %v388 = vunpack.c.l.b16 %v352
    %v389 = vunpack.c.l.b16 %v353
    %v390 = vunpack.c.l.b16 %v354
    %v391 = vunpack.c.l.b16 %v355
    %v392 = vunpack.c.l.b16 %v356
    %v393 = vunpack.c.l.b16 %v357
    %v394 = vunpack.c.l.b16 %v358
    %v395 = vunpack.c.l.b16 %v359
    %v396 = vunpack.c.l.b16 %v360
    %v397 = vunpack.c.l.b16 %v361
    %v398 = vpack.c.b16 %v383, %v382
    %v399 = vpack.c.b16 %v385, %v384
    %v400 = vpack.c.b16 %v387, %v386
    %v401 = vpack.c.b16 %v389, %v388
    %v402 = vpack.c.b16 %v391, %v390
    %v403 = vpack.c.b16 %v393, %v392
    %v404 = vpack.c.b16 %v395, %v394
    %v405 = vpack.c.b16 %v397, %v396
    %414 = vmatpush.bf16.msra.mxu0 %v405
    %415 = vmatpush.bf16.msra.mxu0 %v404
    %416 = vmatpush.bf16.msra.mxu0 %v403
    %417 = vmatpush.bf16.msra.mxu0 %v402
    %418 = vmatpush.bf16.msra.mxu0 %v401
    %419 = vmatpush.bf16.msra.mxu0 %v400
    %420 = vmatpush.bf16.msra.mxu0 %v399
    %421 = vmatpush.bf16.msra.mxu0 %v398
    %422 = vmatmul.bf16.gmra.mxu0 %v345
    %v423 = vpop.f32.mrf.mxu0
    %v424 = vadd.f32 %v364, %v423
    %v425 = vpop.f32.mrf.mxu0
    %426 = vdwg.mxu0
    %v427 = vpack.c.bf16 %v424, %v424
    %v428 = vunpack.c.l.bf16 %v427
    %v429 = vtanh.pop %v428
    %v430 = vpack.c.bf16 %v429, %v429
    %v431 = vld [vmem:[#allocation9] sm:$0xf]
    %v432 = vld [vmem:[#allocation9 + $0x4] sm:$0xf]
    %v433 = vld [vmem:[#allocation9 + $0x8] sm:$0xf]
    %v434 = vld [vmem:[#allocation9 + $0xc] sm:$0xf]
    %v435 = vld [vmem:[#allocation9 + $0x10] sm:$0xf]
    %v436 = vld [vmem:[#allocation9 + $0x14] sm:$0xf]
    %v437 = vld [vmem:[#allocation9 + $0x18] sm:$0xf]
    %v438 = vld [vmem:[#allocation9 + $0x1c] sm:$0xf]
    %v439 = vld [vmem:[#allocation9 + $0x20] sm:$0xf]
    %v440 = vld [vmem:[#allocation9 + $0x24] sm:$0xf]
    %v441 = vld [vmem:[#allocation9 + $0x28] sm:$0xf]
    %v442 = vld [vmem:[#allocation9 + $0x2c] sm:$0xf]
    %v443 = vld [vmem:[#allocation9 + $0x30] sm:$0xf]
    %v444 = vld [vmem:[#allocation9 + $0x34] sm:$0xf]
    %v445 = vld [vmem:[#allocation9 + $0x38] sm:$0xf]
    %v446 = vld [vmem:[#allocation9 + $0x3c] sm:$0xf]
    %v447 = vld [vmem:[%s10] sm:$0x1]
    %v449 = vperm.slane %v447, 0
    %v467 = vunpack.c.l.b16 %v431
    %v468 = vunpack.c.l.b16 %v432
    %v469 = vunpack.c.l.b16 %v433
    %v470 = vunpack.c.l.b16 %v434
    %v471 = vunpack.c.l.b16 %v435
    %v472 = vunpack.c.l.b16 %v436
    %v473 = vunpack.c.l.b16 %v437
    %v474 = vunpack.c.l.b16 %v438
    %v475 = vunpack.c.l.b16 %v439
    %v476 = vunpack.c.l.b16 %v440
    %v477 = vunpack.c.l.b16 %v441
    %v478 = vunpack.c.l.b16 %v442
    %v479 = vunpack.c.l.b16 %v443
    %v480 = vunpack.c.l.b16 %v444
    %v481 = vunpack.c.l.b16 %v445
    %v482 = vunpack.c.l.b16 %v446
    %v483 = vpack.c.b16 %v468, %v467
    %v484 = vpack.c.b16 %v470, %v469
    %v485 = vpack.c.b16 %v472, %v471
    %v486 = vpack.c.b16 %v474, %v473
    %v487 = vpack.c.b16 %v476, %v475
    %v488 = vpack.c.b16 %v478, %v477
    %v489 = vpack.c.b16 %v480, %v479
    %v490 = vpack.c.b16 %v482, %v481
    %499 = vmatpush.bf16.msra.mxu0 %v490
    %500 = vmatpush.bf16.msra.mxu0 %v489
    %501 = vmatpush.bf16.msra.mxu0 %v488
    %502 = vmatpush.bf16.msra.mxu0 %v487
    %503 = vmatpush.bf16.msra.mxu0 %v486
    %504 = vmatpush.bf16.msra.mxu0 %v485
    %505 = vmatpush.bf16.msra.mxu0 %v484
    %506 = vmatpush.bf16.msra.mxu0 %v483
    %507 = vmatmul.bf16.gmra.mxu0 %v430
    %v508 = vpop.f32.mrf.mxu0
    %v509 = vadd.f32 %v449, %v508
    %v510 = vpop.f32.mrf.mxu0
    %511 = vdwg.mxu0
    %512 = vst [vmem:[%s11] sm:$0xff] %v509
    // Predicated region
    $region66: #{cnn1d_forward.1} parent=1 // pred_check
      _
    $region67: #{cnn1d_forward.1} parent=1 // pred_check_branch
      %514 = sbr.rel (0) target = $region69
    $region68: #{cnn1d_forward.1} parent=1 // pred_region
      _
    $region69: #{cnn1d_forward.1} parent=1 // pred_fallthru
      _
    // Predicated region
    $region70: #{cnn1d_forward.1} parent=1 // pred_check
      _
    $region71: #{cnn1d_forward.1} parent=1 // pred_check_branch
      %516 = sbr.rel (0) target = $region73
    $region72: #{cnn1d_forward.1} parent=1 // pred_region
      _
    $region73: #{cnn1d_forward.1} parent=1 // pred_fallthru
      _
    %517 = vsyncpa [#allocation3], 1
    %518 = vsyncpa [#allocation5], 1
    %519 = vsyncpa [#allocation8], 1

</llo_original>
